<compile_context>
chip_gen: v5e
topology: v5e:2x2
jax: 0.10.0
libtpu: 0.0.40
codegen_flags: <defaults>
</compile_context>

<pallas_src>
import numpy as np
import jax
import jax.numpy as jnp
from jax.experimental import pallas as pl
from jax.experimental.pallas import tpu as pltpu


# ----------------------------- config (synthetic) -----------------------------
VOCAB_SIZE = 50
EMBED_DIM = 32
N_FILTERS = 16
FILTER_SIZES = (2, 3, 4)
OUTPUT_DIM = 4
PAD_IDX = 0
BATCH = 2
SEQ_LEN = 8
DROPOUT = 0.5                          # inference mode -> identity

FS_MIN = min(FILTER_SIZES)
FS_MAX = max(FILTER_SIZES)
L_OUT = SEQ_LEN - FS_MIN + 1           # 7 = widest valid output range
L_PAD = SEQ_LEN + (FS_MAX - FS_MIN)    # 10 = pad tail so the fs_max window fits
PF = len(FILTER_SIZES) * N_FILTERS     # 48 concatenated filters
PF_PAD = 128                           # lane-dense filter axis (zero-padded)
O_PAD = 128                            # lane-dense output store (sliced outside)
SENTINEL = VOCAB_SIZE                  # extra all-zero embedding row for padding
V_PAD = 64                             # vocab(50) + sentinel, rounded for sublanes
MAX_TILE_B = 512                       # batch rows per grid step (VMEM-sized)


# --------------------------------- kernel -------------------------------------
def textcnn_kernel(ids_ref,    # (TB, L_PAD, 1)        int32
                   tbl_ref,    # (V_PAD, E)            bf16   embedding table
                   w_ref,      # (FS_MAX, E, PF_PAD)   bf16   per-tap conv weights
                   valid_ref,  # (1, L_OUT, PF_PAD)    f32    1.0 = valid pool pos
                   b_ref,      # (1, PF_PAD)           f32    conv bias
                   fcw_ref,    # (PF_PAD, O_PAD)       bf16   fc weight (transposed)
                   fcb_ref,    # (1, O_PAD)            f32    fc bias
                   out_ref):   # (TB, O_PAD)           f32
    tb, l_pad, _ = ids_ref.shape
    v_pad = tbl_ref.shape[0]
    fs_max = w_ref.shape[0]
    l_out = valid_ref.shape[1]

    # ---- fused embedding gather: exact one-hot row-select on the MXU ----
    ids = ids_ref[...]                                             # (TB, L_PAD, 1)
    vocab_iota = jax.lax.broadcasted_iota(jnp.int32, (tb, l_pad, v_pad), 2)
    onehot = (ids == vocab_iota).astype(jnp.bfloat16)              # (TB, L_PAD, V_PAD)
    x = jax.lax.dot_general(                                       # (TB, L_PAD, E) f32
        onehot, tbl_ref[...],
        dimension_numbers=(((2,), (0,)), ((), ())),
        preferred_element_type=jnp.float32)

    # ---- conv: FS_MAX per-tap dots (K = E), f32 accumulation ----
    # Window slices are taken on the unpacked f32 gather result (no packed
    # sublane shifts); only the MXU operands get packed to bf16 — no lane-concat.
    conv = None
    for k in range(fs_max):
        xk = x[:, k:k + l_out, :].astype(jnp.bfloat16)             # (TB, L_OUT, E)
        ck = jax.lax.dot_general(
            xk, w_ref[k],
            dimension_numbers=(((2,), (0,)), ((), ())),
            preferred_element_type=jnp.float32)                    # (TB, L_OUT, PF_PAD)
        conv = ck if conv is None else conv + ck

    # ---- masked max-pool over time; bias + ReLU hoisted past the max ----
    neg = jnp.finfo(jnp.float32).min
    conv = jnp.where(valid_ref[...] != 0.0, conv, neg)
    pooled = jnp.max(conv, axis=1)                                 # (TB, PF_PAD)
    pooled = jnp.maximum(pooled + b_ref[...], 0.0)

    # ---- dropout = identity (eval); final FC with a lane-dense store ----
    out_ref[...] = jax.lax.dot_general(
        pooled.astype(jnp.bfloat16), fcw_ref[...],
        dimension_numbers=(((1,), (0,)), ((), ())),
        preferred_element_type=jnp.float32) + fcb_ref[...]


# --------------------------------- wrapper -------------------------------------
def textcnn_forward(token_ids, tbl_pad, w_taps, valid_mask, b_comb, fcw_pad, fcb_pad):
    """token_ids: (B, L) int32.  Returns (B, OUTPUT_DIM) float32."""
    B, L = token_ids.shape
    assert L == SEQ_LEN

    tile_b = min(B, MAX_TILE_B)
    b_pad = ((B + tile_b - 1) // tile_b) * tile_b
    grid = (b_pad // tile_b,)

    # Sequence-tail + batch-remainder padding with the sentinel id (maps to an
    # all-zero embedding row).  Only int32 ids travel through HBM.
    ids = jnp.pad(token_ids.astype(jnp.int32),
                  ((0, b_pad - B), (0, L_PAD - L)),
                  constant_values=SENTINEL)[:, :, None]            # (b_pad, L_PAD, 1)

    flops = (2 * b_pad * L_PAD * V_PAD * EMBED_DIM                 # one-hot gather
             + 2 * b_pad * L_OUT * FS_MAX * EMBED_DIM * PF_PAD     # conv taps
             + 2 * b_pad * PF_PAD * O_PAD)                         # fc
    bytes_accessed = (ids.size * 4 + tbl_pad.size * 2 + w_taps.size * 2
                      + valid_mask.size * 4 + b_comb.size * 4
                      + fcw_pad.size * 2 + fcb_pad.size * 4
                      + b_pad * O_PAD * 4)

    out = pl.pallas_call(
        textcnn_kernel,
        out_shape=jax.ShapeDtypeStruct((b_pad, O_PAD), jnp.float32),
        grid=grid,
        in_specs=[
            pl.BlockSpec((tile_b, L_PAD, 1), lambda b: (b, 0, 0)),           # token ids
            pl.BlockSpec((V_PAD, EMBED_DIM), lambda b: (0, 0)),              # embed table
            pl.BlockSpec((FS_MAX, EMBED_DIM, PF_PAD), lambda b: (0, 0, 0)),  # conv taps
            pl.BlockSpec((1, L_OUT, PF_PAD), lambda b: (0, 0, 0)),           # pool validity
            pl.BlockSpec((1, PF_PAD), lambda b: (0, 0)),                     # conv bias
            pl.BlockSpec((PF_PAD, O_PAD), lambda b: (0, 0)),                 # fc weight^T
            pl.BlockSpec((1, O_PAD), lambda b: (0, 0)),                      # fc bias
        ],
        out_specs=pl.BlockSpec((tile_b, O_PAD), lambda b: (b, 0)),
        compiler_params=pltpu.CompilerParams(
            dimension_semantics=("parallel",),
            vmem_limit_bytes=32 * 1024 * 1024),
        cost_estimate=pl.CostEstimate(
            flops=flops, transcendentals=0, bytes_accessed=bytes_accessed),
    )(ids, tbl_pad, w_taps, valid_mask, b_comb, fcw_pad, fcb_pad)

    return out[:B, :OUTPUT_DIM]


# --------------------------- parameter re-layout helpers -----------------------
def build_padded_table(emb_table):
    tbl = jnp.zeros((V_PAD, EMBED_DIM), jnp.float32)
    tbl = tbl.at[:VOCAB_SIZE].set(emb_table)        # rows VOCAB_SIZE.. stay zero
    return tbl.astype(jnp.bfloat16)


def build_tap_weights(conv_ws):
    """PyTorch Conv1d weights [(F, E, fs)] -> per-tap (FS_MAX, E, PF_PAD) bf16."""
    taps = []
    for k in range(FS_MAX):
        blocks = []
        for w in conv_ws:
            fs = w.shape[2]
            blk = (jnp.transpose(w[:, :, k]) if k < fs
                   else jnp.zeros((EMBED_DIM, N_FILTERS), jnp.float32))
            blocks.append(blk)                                   # (E, F)
        tap = jnp.concatenate(blocks, axis=1)                    # (E, PF)
        taps.append(jnp.pad(tap, ((0, 0), (0, PF_PAD - PF))))
    return jnp.stack(taps, axis=0).astype(jnp.bfloat16)          # (FS_MAX, E, PF_PAD)


def build_valid_mask():
    """(1, L_OUT, PF_PAD) f32: 1 on pool positions valid for that filter group."""
    m = np.ones((1, L_OUT, PF_PAD), np.float32)
    for i, fs in enumerate(FILTER_SIZES):
        valid = SEQ_LEN - fs + 1
        m[0, valid:, i * N_FILTERS:(i + 1) * N_FILTERS] = 0.0
    return jnp.asarray(m)


# ----------------------------- pure-JAX reference ------------------------------
def reference_forward(embed_f32, conv_ws, conv_bs, fc_w, fc_b):
    """Mirrors PyTorch semantics with lax.conv_general_dilated (NCW layout)."""
    embed_ncw = jnp.transpose(embed_f32, (0, 2, 1))
    pooled = []
    for w, b in zip(conv_ws, conv_bs):                           # w: (F, E, fs) OIW
        conv = jax.lax.conv_general_dilated(
            embed_ncw, w, window_strides=(1,), padding='VALID',
            dimension_numbers=('NCH', 'OIH', 'NCH'))
        conv = jax.nn.relu(conv + b[None, :, None])
        pooled.append(jnp.max(conv, axis=2))                     # (B, F)
    cat = jnp.concatenate(pooled, axis=1)                        # (B, PF)
    return cat @ fc_w.T + fc_b


# ----------------------------------- main --------------------------------------
if __name__ == "__main__":
    key = jax.random.PRNGKey(0)
    keys = jax.random.split(key, 12)

    # Parameters (deterministic synthetic init).
    emb_table = jax.random.normal(keys[0], (VOCAB_SIZE, EMBED_DIM), jnp.float32) * 0.1
    emb_table = emb_table.at[PAD_IDX].set(0.0)                   # padding_idx row zero

    conv_ws, conv_bs = [], []
    for i, fs in enumerate(FILTER_SIZES):
        conv_ws.append(
            jax.random.normal(keys[1 + i], (N_FILTERS, EMBED_DIM, fs), jnp.float32) * 0.1)
        conv_bs.append(
            jax.random.normal(keys[4 + i], (N_FILTERS,), jnp.float32) * 0.1)

    fc_w = jax.random.normal(keys[7], (OUTPUT_DIM, PF), jnp.float32) * 0.1
    fc_b = jax.random.normal(keys[8], (OUTPUT_DIM,), jnp.float32) * 0.1

    # Input token ids (B, L).
    text = jax.random.randint(keys[9], (BATCH, SEQ_LEN), 0, VOCAB_SIZE, jnp.int32)

    # Kernel-layout params (bf16 MXU operands, f32 accumulation / biases).
    tbl_pad = build_padded_table(emb_table)                       # (V_PAD, E)        bf16
    w_taps = build_tap_weights(conv_ws)                           # (FS_MAX,E,PF_PAD) bf16
    valid_mask = build_valid_mask()                               # (1,L_OUT,PF_PAD)  f32
    b_comb = jnp.pad(jnp.concatenate(conv_bs), (0, PF_PAD - PF)).reshape(1, PF_PAD)
    fcw_pad = jnp.pad(fc_w.T, ((0, PF_PAD - PF),
                               (0, O_PAD - OUTPUT_DIM))).astype(jnp.bfloat16)
    fcb_pad = jnp.pad(fc_b, (0, O_PAD - OUTPUT_DIM)).reshape(1, O_PAD)

    out = textcnn_forward(text, tbl_pad, w_taps, valid_mask, b_comb, fcw_pad, fcb_pad)
    out = jax.block_until_ready(out)

    # Correctness check vs. a JAX reference that uses the same bf16-rounded
    # weights (the bf16 quantization itself is not under test; the fused
    # gather + conv + pool + fc kernel math is).
    emb_q = emb_table.astype(jnp.bfloat16).astype(jnp.float32)
    conv_ws_q = [w.astype(jnp.bfloat16).astype(jnp.float32) for w in conv_ws]
    fc_w_q = fc_w.astype(jnp.bfloat16).astype(jnp.float32)
    ref = reference_forward(emb_q[text], conv_ws_q, conv_bs, fc_w_q, fc_b)

    assert out.shape == (BATCH, OUTPUT_DIM)
    assert jnp.allclose(out, ref, atol=2e-3, rtol=2e-3), (out, ref)

    print("KERNEL_OK")
</pallas_src>

<mosaic_0001>
module attributes {stable_mosaic.version = 11 : i64} {
  func.func @textcnn_kernel(%arg0: i32, %arg1: memref<2x10x1xi32, #tpu.memory_space<vmem>>, %arg2: memref<64x32xbf16, #tpu.memory_space<vmem>>, %arg3: memref<4x32x128xbf16, #tpu.memory_space<vmem>>, %arg4: memref<1x7x128xf32, #tpu.memory_space<vmem>>, %arg5: memref<1x128xf32, #tpu.memory_space<vmem>>, %arg6: memref<128x128xbf16, #tpu.memory_space<vmem>>, %arg7: memref<1x128xf32, #tpu.memory_space<vmem>>, %arg8: memref<2x128xf32, #tpu.memory_space<vmem>>) attributes {dimension_semantics = [#tpu.dimension_semantics<parallel>], iteration_bounds = array<i64: 1>, scalar_prefetch = 0 : i64, scratch_operands = 0 : i64, tpu.core_type = #tpu.core_type<tc>, window_params = [{transform_indices = @transform_0, window_bounds = array<i64: 2, 10, 1>}, {pipeline_mode = #tpu.pipeline_mode<synchronous>, transform_indices = @transform_1, window_bounds = array<i64: 64, 32>}, {pipeline_mode = #tpu.pipeline_mode<synchronous>, transform_indices = @transform_2, window_bounds = array<i64: 4, 32, 128>}, {pipeline_mode = #tpu.pipeline_mode<synchronous>, transform_indices = @transform_3, window_bounds = array<i64: 1, 7, 128>}, {pipeline_mode = #tpu.pipeline_mode<synchronous>, transform_indices = @transform_4, window_bounds = array<i64: 1, 128>}, {pipeline_mode = #tpu.pipeline_mode<synchronous>, transform_indices = @transform_5, window_bounds = array<i64: 128, 128>}, {pipeline_mode = #tpu.pipeline_mode<synchronous>, transform_indices = @transform_6, window_bounds = array<i64: 1, 128>}, {transform_indices = @transform_7, window_bounds = array<i64: 2, 128>}]} {
    %c0 = arith.constant 0 : index
    %c0_0 = arith.constant 0 : index
    %c0_1 = arith.constant 0 : index
    %0 = vector.load %arg1[%c0, %c0_0, %c0_1] : memref<2x10x1xi32, #tpu.memory_space<vmem>>, vector<2x10x1xi32>
    %1 = tpu.iota {dimensions = array<i32: 2>} : vector<2x10x64xi32>
    %2 = vector.broadcast %0 : vector<2x10x1xi32> to vector<2x10x64xi32>
    %3 = arith.cmpi eq, %2, %1 : vector<2x10x64xi32>
    %4 = arith.extui %3 : vector<2x10x64xi1> to vector<2x10x64xi32>
    %5 = arith.sitofp %4 : vector<2x10x64xi32> to vector<2x10x64xf32>
    %6 = arith.truncf %5 : vector<2x10x64xf32> to vector<2x10x64xbf16>
    %c0_2 = arith.constant 0 : index
    %c0_3 = arith.constant 0 : index
    %7 = vector.load %arg2[%c0_2, %c0_3] : memref<64x32xbf16, #tpu.memory_space<vmem>>, vector<64x32xbf16>
    %cst = arith.constant dense<0.000000e+00> : vector<2x10x32xf32>
    %8 = tpu.matmul %6, %7, %cst {dimension_numbers = #tpu.dot_dimension_numbers<[2], [0], [0, 1], [1], [0, 0, 0, 1, 1, 1], [], []>} : vector<2x10x64xbf16>, vector<64x32xbf16>, vector<2x10x32xf32> -> vector<2x10x32xf32>
    %9 = vector.extract_strided_slice %8 {offsets = [0, 0, 0], sizes = [2, 7, 32], strides = [1, 1, 1]} : vector<2x10x32xf32> to vector<2x7x32xf32>
    %10 = arith.truncf %9 : vector<2x7x32xf32> to vector<2x7x32xbf16>
    %c0_4 = arith.constant 0 : index
    %c0_5 = arith.constant 0 : index
    %c0_6 = arith.constant 0 : index
    %11 = vector.load %arg3[%c0_4, %c0_5, %c0_6] : memref<4x32x128xbf16, #tpu.memory_space<vmem>>, vector<1x32x128xbf16>
    %12 = vector.shape_cast %11 : vector<1x32x128xbf16> to vector<32x128xbf16>
    %cst_7 = arith.constant dense<0.000000e+00> : vector<2x7x128xf32>
    %13 = tpu.matmul %10, %12, %cst_7 {dimension_numbers = #tpu.dot_dimension_numbers<[2], [0], [0, 1], [1], [0, 0, 0, 1, 1, 1], [], []>} : vector<2x7x32xbf16>, vector<32x128xbf16>, vector<2x7x128xf32> -> vector<2x7x128xf32>
    %14 = vector.extract_strided_slice %8 {offsets = [0, 1, 0], sizes = [2, 7, 32], strides = [1, 1, 1]} : vector<2x10x32xf32> to vector<2x7x32xf32>
    %15 = arith.truncf %14 : vector<2x7x32xf32> to vector<2x7x32xbf16>
    %c1 = arith.constant 1 : index
    %c0_8 = arith.constant 0 : index
    %c0_9 = arith.constant 0 : index
    %16 = vector.load %arg3[%c1, %c0_8, %c0_9] : memref<4x32x128xbf16, #tpu.memory_space<vmem>>, vector<1x32x128xbf16>
    %17 = vector.shape_cast %16 : vector<1x32x128xbf16> to vector<32x128xbf16>
    %cst_10 = arith.constant dense<0.000000e+00> : vector<2x7x128xf32>
    %18 = tpu.matmul %15, %17, %cst_10 {dimension_numbers = #tpu.dot_dimension_numbers<[2], [0], [0, 1], [1], [0, 0, 0, 1, 1, 1], [], []>} : vector<2x7x32xbf16>, vector<32x128xbf16>, vector<2x7x128xf32> -> vector<2x7x128xf32>
    %19 = arith.addf %13, %18 : vector<2x7x128xf32>
    %20 = vector.extract_strided_slice %8 {offsets = [0, 2, 0], sizes = [2, 7, 32], strides = [1, 1, 1]} : vector<2x10x32xf32> to vector<2x7x32xf32>
    %21 = arith.truncf %20 : vector<2x7x32xf32> to vector<2x7x32xbf16>
    %c2 = arith.constant 2 : index
    %c0_11 = arith.constant 0 : index
    %c0_12 = arith.constant 0 : index
    %22 = vector.load %arg3[%c2, %c0_11, %c0_12] : memref<4x32x128xbf16, #tpu.memory_space<vmem>>, vector<1x32x128xbf16>
    %23 = vector.shape_cast %22 : vector<1x32x128xbf16> to vector<32x128xbf16>
    %cst_13 = arith.constant dense<0.000000e+00> : vector<2x7x128xf32>
    %24 = tpu.matmul %21, %23, %cst_13 {dimension_numbers = #tpu.dot_dimension_numbers<[2], [0], [0, 1], [1], [0, 0, 0, 1, 1, 1], [], []>} : vector<2x7x32xbf16>, vector<32x128xbf16>, vector<2x7x128xf32> -> vector<2x7x128xf32>
    %25 = arith.addf %19, %24 : vector<2x7x128xf32>
    %26 = vector.extract_strided_slice %8 {offsets = [0, 3, 0], sizes = [2, 7, 32], strides = [1, 1, 1]} : vector<2x10x32xf32> to vector<2x7x32xf32>
    %27 = arith.truncf %26 : vector<2x7x32xf32> to vector<2x7x32xbf16>
    %c3 = arith.constant 3 : index
    %c0_14 = arith.constant 0 : index
    %c0_15 = arith.constant 0 : index
    %28 = vector.load %arg3[%c3, %c0_14, %c0_15] : memref<4x32x128xbf16, #tpu.memory_space<vmem>>, vector<1x32x128xbf16>
    %29 = vector.shape_cast %28 : vector<1x32x128xbf16> to vector<32x128xbf16>
    %cst_16 = arith.constant dense<0.000000e+00> : vector<2x7x128xf32>
    %30 = tpu.matmul %27, %29, %cst_16 {dimension_numbers = #tpu.dot_dimension_numbers<[2], [0], [0, 1], [1], [0, 0, 0, 1, 1, 1], [], []>} : vector<2x7x32xbf16>, vector<32x128xbf16>, vector<2x7x128xf32> -> vector<2x7x128xf32>
    %31 = arith.addf %25, %30 : vector<2x7x128xf32>
    %c0_17 = arith.constant 0 : index
    %c0_18 = arith.constant 0 : index
    %c0_19 = arith.constant 0 : index
    %32 = vector.load %arg4[%c0_17, %c0_18, %c0_19] : memref<1x7x128xf32, #tpu.memory_space<vmem>>, vector<1x7x128xf32>
    %cst_20 = arith.constant 0.000000e+00 : f32
    %33 = vector.broadcast %cst_20 : f32 to vector<1x7x128xf32>
    %34 = arith.cmpf one, %32, %33 : vector<1x7x128xf32>
    %cst_21 = arith.constant -3.40282347E+38 : f32
    %35 = vector.shape_cast %34 : vector<1x7x128xi1> to vector<1x7x128xi1>
    %36 = vector.broadcast %35 : vector<1x7x128xi1> to vector<2x7x128xi1>
    %37 = vector.broadcast %cst_21 : f32 to vector<2x7x128xf32>
    %38 = arith.select %36, %31, %37 : vector<2x7x128xi1>, vector<2x7x128xf32>
    %cst_22 = arith.constant dense<0xFF800000> : vector<2x128xf32>
    %39 = vector.multi_reduction <maximumf>, %38, %cst_22 [1] : vector<2x7x128xf32> to vector<2x128xf32>
    %c0_23 = arith.constant 0 : index
    %c0_24 = arith.constant 0 : index
    %40 = vector.load %arg5[%c0_23, %c0_24] : memref<1x128xf32, #tpu.memory_space<vmem>>, vector<1x128xf32>
    %41 = vector.broadcast %40 : vector<1x128xf32> to vector<2x128xf32>
    %42 = arith.addf %39, %41 : vector<2x128xf32>
    %cst_25 = arith.constant 0.000000e+00 : f32
    %43 = vector.broadcast %cst_25 : f32 to vector<2x128xf32>
    %44 = arith.maximumf %42, %43 : vector<2x128xf32>
    %45 = arith.truncf %44 : vector<2x128xf32> to vector<2x128xbf16>
    %c0_26 = arith.constant 0 : index
    %c0_27 = arith.constant 0 : index
    %46 = vector.load %arg6[%c0_26, %c0_27] : memref<128x128xbf16, #tpu.memory_space<vmem>>, vector<128x128xbf16>
    %cst_28 = arith.constant dense<0.000000e+00> : vector<2x128xf32>
    %47 = tpu.matmul %45, %46, %cst_28 {dimension_numbers = #tpu.dot_dimension_numbers<[1], [0], [0], [1], [0, 0, 1, 1], [], []>} : vector<2x128xbf16>, vector<128x128xbf16>, vector<2x128xf32> -> vector<2x128xf32>
    %c0_29 = arith.constant 0 : index
    %c0_30 = arith.constant 0 : index
    %48 = vector.load %arg7[%c0_29, %c0_30] : memref<1x128xf32, #tpu.memory_space<vmem>>, vector<1x128xf32>
    %49 = vector.broadcast %48 : vector<1x128xf32> to vector<2x128xf32>
    %50 = arith.addf %47, %49 : vector<2x128xf32>
    %c0_31 = arith.constant 0 : index
    %c0_32 = arith.constant 0 : index
    %51 = vector.load %arg8[%c0_31, %c0_32] : memref<2x128xf32, #tpu.memory_space<vmem>>, vector<2x128xf32>
    tpu.vector_store %arg8[%c0_31, %c0_32], %50 {strides = array<i32>} : memref<2x128xf32, #tpu.memory_space<vmem>>, vector<2x128xf32>,
    return
  }
  func.func @transform_0(%arg0: i32) -> (i32, i32, i32) {
    %c0_i32 = arith.constant 0 : i32
    %c0_i32_0 = arith.constant 0 : i32
    %c0_i32_1 = arith.constant 0 : i32
    return %arg0, %c0_i32, %c0_i32_0 : i32, i32, i32
  }
  func.func @transform_1(%arg0: i32) -> (i32, i32) {
    %c0_i32 = arith.constant 0 : i32
    %c0_i32_0 = arith.constant 0 : i32
    %c0_i32_1 = arith.constant 0 : i32
    return %c0_i32, %c0_i32_0 : i32, i32
  }
  func.func @transform_2(%arg0: i32) -> (i32, i32, i32) {
    %c0_i32 = arith.constant 0 : i32
    %c0_i32_0 = arith.constant 0 : i32
    %c0_i32_1 = arith.constant 0 : i32
    %c0_i32_2 = arith.constant 0 : i32
    return %c0_i32, %c0_i32_0, %c0_i32_1 : i32, i32, i32
  }
  func.func @transform_3(%arg0: i32) -> (i32, i32, i32) {
    %c0_i32 = arith.constant 0 : i32
    %c0_i32_0 = arith.constant 0 : i32
    %c0_i32_1 = arith.constant 0 : i32
    %c0_i32_2 = arith.constant 0 : i32
    return %c0_i32, %c0_i32_0, %c0_i32_1 : i32, i32, i32
  }
  func.func @transform_4(%arg0: i32) -> (i32, i32) {
    %c0_i32 = arith.constant 0 : i32
    %c0_i32_0 = arith.constant 0 : i32
    %c0_i32_1 = arith.constant 0 : i32
    return %c0_i32, %c0_i32_0 : i32, i32
  }
  func.func @transform_5(%arg0: i32) -> (i32, i32) {
    %c0_i32 = arith.constant 0 : i32
    %c0_i32_0 = arith.constant 0 : i32
    %c0_i32_1 = arith.constant 0 : i32
    return %c0_i32, %c0_i32_0 : i32, i32
  }
  func.func @transform_6(%arg0: i32) -> (i32, i32) {
    %c0_i32 = arith.constant 0 : i32
    %c0_i32_0 = arith.constant 0 : i32
    %c0_i32_1 = arith.constant 0 : i32
    return %c0_i32, %c0_i32_0 : i32, i32
  }
  func.func @transform_7(%arg0: i32) -> (i32, i32) {
    %c0_i32 = arith.constant 0 : i32
    %c0_i32_0 = arith.constant 0 : i32
    return %arg0, %c0_i32 : i32, i32
  }
}

</mosaic_0001>

<llo_original>
// kernel: tpu_custom_call.1
$region0: #{tpu_custom_call.1}
  #allocation0 [shape = 'u32[]', space=smem, size = 0x4, offset = 0x4, fixed_abs, tag = 'smem constant byte address 0x4 - core index']
  #allocation1 [shape = 'u32[72,128]{1,0:T(1,128)}', space=vmem, size = 0x9000, scoped, tag = 'internal scratch']
  %s0 = inlined_call_operand.vmem [shape: s32[2,10,1], index: 0, kind: input, shape index: {}]
  %s1 = inlined_call_operand.vmem [shape: bf16[64,32], index: 1, kind: input, shape index: {}]
  %s2 = inlined_call_operand.vmem [shape: bf16[4,32,128], index: 2, kind: input, shape index: {}]
  %s3 = inlined_call_operand.vmem [shape: f32[1,7,128], index: 3, kind: input, shape index: {}]
  %s4 = inlined_call_operand.vmem [shape: f32[1,128], index: 4, kind: input, shape index: {}]
  %s5 = inlined_call_operand.hbm [shape: bf16[128,128], index: 5, kind: input, shape index: {}]
  %s6 = inlined_call_operand.vmem [shape: f32[1,128], index: 6, kind: input, shape index: {}]
  %s7 = inlined_call_operand.hbm [shape: f32[2,128], index: 7, kind: output, shape index: {}]
  %s8 = sld [smem:[#allocation0]]
  $region42: #{tpu_custom_call.1} parent=0
    _
  %s10 = ssub.s32 1, %s8
  %s11 = scalar_select 0, %s10, %s8
  $region1: #{tpu_custom_call.1} parent=0
    #allocation2 [shape = 'u8[32768]{0}', space=vmem, size = 0x8000, scoped, tag = 'input window, operand 5, single buffered']
    #allocation3 [shape = 's32[1]{0}', space=sflag, size = 0x4, scoped, tag = 'scoped memory for tpu_custom_call.1']
    #allocation4 [shape = 's32[1]{0}', space=sflag, size = 0x4, scoped, tag = 'scoped memory for tpu_custom_call.1']
    #allocation5 [shape = 'u8[1024]{0}', space=vmem, size = 0x400, scoped, tag = 'output window, operand 0, single buffered']
    %12 = vsyncpa [#allocation3], 0
    %13 = vsyncpa [#allocation4], 0
    // Predicated region
    $region2: #{tpu_custom_call.1} parent=1 // pred_check
      _
    $region3: #{tpu_custom_call.1} parent=1 // pred_check_branch
      %15 = sbr.rel (0) target = $region5
    $region4: #{tpu_custom_call.1} parent=1 // pred_region
      _
    $region5: #{tpu_custom_call.1} parent=1 // pred_fallthru
      _
    // Predicated region
    $region6: #{tpu_custom_call.1} parent=1 // pred_check
      _
    $region7: #{tpu_custom_call.1} parent=1 // pred_check_branch
      %17 = sbr.rel (0) target = $region9
    $region8: #{tpu_custom_call.1} parent=1 // pred_region
      _
    $region9: #{tpu_custom_call.1} parent=1 // pred_fallthru
      _
    // Predicated region
    $region10: #{tpu_custom_call.1} parent=1 // pred_check
      _
    $region11: #{tpu_custom_call.1} parent=1 // pred_check_branch
      %19 = sbr.rel (0) target = $region13
    $region12: #{tpu_custom_call.1} parent=1 // pred_region
      _
    $region13: #{tpu_custom_call.1} parent=1 // pred_fallthru
      _
    // Predicated region
    $region14: #{tpu_custom_call.1} parent=1 // pred_check
      _
    $region15: #{tpu_custom_call.1} parent=1 // pred_check_branch
      %21 = sbr.rel (0) target = $region17
    $region16: #{tpu_custom_call.1} parent=1 // pred_region
      _
    $region17: #{tpu_custom_call.1} parent=1 // pred_fallthru
      _
    // Predicated region
    $region18: #{tpu_custom_call.1} parent=1 // pred_check
      _
    $region19: #{tpu_custom_call.1} parent=1 // pred_check_branch
      %23 = sbr.rel (0) target = $region21
    $region20: #{tpu_custom_call.1} parent=1 // pred_region
      _
    $region21: #{tpu_custom_call.1} parent=1 // pred_fallthru
      _
    // Predicated region
    $region22: #{tpu_custom_call.1} parent=1 // pred_check
      _
    $region23: #{tpu_custom_call.1} parent=1 // pred_check_branch
      %25 = sbr.rel (0) target = $region25
    $region24: #{tpu_custom_call.1} parent=1 // pred_region
      %27 = vsyncadd [#allocation3], 0
      %s28 = sshll.u32 %s5, 4
      %s29 = int_to_ptr.hbm [resolvable:$true] %s28
      %s30 = sshll.u32 [#allocation2], 4
      %s31 = int_to_ptr.vmem [resolvable:$true] %s30
      %36 = dma.hbm_to_vmem [thread:$0]  %s29, 1024, %s31, [#allocation3], 64, 64, 4
    $region25: #{tpu_custom_call.1} parent=1 // pred_fallthru
      _
    // Predicated region
    $region26: #{tpu_custom_call.1} parent=1 // pred_check
      _
    $region27: #{tpu_custom_call.1} parent=1 // pred_check_branch
      %38 = sbr.rel (0) target = $region29
    $region28: #{tpu_custom_call.1} parent=1 // pred_region
      _
    $region29: #{tpu_custom_call.1} parent=1 // pred_fallthru
      _
    // Predicated region
    $region30: #{tpu_custom_call.1} parent=1 // pred_check
      _
    $region31: #{tpu_custom_call.1} parent=1 // pred_check_branch
      %40 = sbr.rel (0) target = $region33
    $region32: #{tpu_custom_call.1} parent=1 // pred_region
      %42 = dma.done [#allocation3], 1024
    $region33: #{tpu_custom_call.1} parent=1 // pred_fallthru
      _
    %v44 = vld [vmem:[%s0] sm:$0xff]
    %v45 = vld [vmem:[%s0 + $0x8] sm:$0x3]
    %v46 = vld [vmem:[%s0 + $0x10] sm:$0xff]
    %v47 = vld [vmem:[%s0 + $0x18] sm:$0x3]
    %v48 = vlaneseq
    %v49 = vand.u32 %v48, 127
    %50 = vset.pattern.permute.xlu0 0
    %51 = vperm.xlu0 %50, %v44
    %v52 = vpop.permute.xlu0 %51
    %53 = vset.pattern.permute.xlu0 0
    %54 = vperm.xlu0 %53, %v45
    %v55 = vpop.permute.xlu0 %54
    %56 = vset.pattern.permute.xlu0 0
    %57 = vperm.xlu0 %56, %v46
    %v58 = vpop.permute.xlu0 %57
    %59 = vset.pattern.permute.xlu0 0
    %60 = vperm.xlu0 %59, %v47
    %v61 = vpop.permute.xlu0 %60
    %vm62 = vcmp.eq.s32.totalorder %v52, %v49
    %vm63 = vcmp.eq.s32.totalorder %v55, %v49
    %vm64 = vcmp.eq.s32.totalorder %v58, %v49
    %vm65 = vcmp.eq.s32.totalorder %v61, %v49
    %v66 = vsel %vm62, 1, 0
    %v67 = vsel %vm63, 1, 0
    %v68 = vsel %vm64, 1, 0
    %v69 = vsel %vm65, 1, 0
    %v70 = vcvt.s32.f32 %v66
    %v71 = vcvt.s32.f32 %v67
    %v72 = vcvt.s32.f32 %v68
    %v73 = vcvt.s32.f32 %v69
    %v74 = vpack.c.bf16 %v70, %v70
    %v75 = vpack.c.bf16 %v71, %v71
    %v76 = vpack.c.bf16 %v72, %v72
    %v77 = vpack.c.bf16 %v73, %v73
    %v78 = vld [vmem:[%s1] sm:$0xf]
    %v79 = vld [vmem:[%s1 + $0x4] sm:$0xf]
    %v80 = vld [vmem:[%s1 + $0x8] sm:$0xf]
    %v81 = vld [vmem:[%s1 + $0xc] sm:$0xf]
    %v82 = vld [vmem:[%s1 + $0x10] sm:$0xf]
    %v83 = vld [vmem:[%s1 + $0x14] sm:$0xf]
    %v84 = vld [vmem:[%s1 + $0x18] sm:$0xf]
    %v85 = vld [vmem:[%s1 + $0x1c] sm:$0xf]
    %v90 = vrot.slane %v74, 3
    %v91 = vrot.slane %v75, 3
    %v92 = vrot.slane %v76, 3
    %v93 = vrot.slane %v77, 3
    %vm94 = vcmask 1040384
    %v97 = vsel %vm94, %v74, %v90
    %vm98 = vcmask 1041409
    %v99 = vsel %vm98, %v74, %v90
    %v101 = vrot.slane %v99, 1
    %vm102 = vcmask 1042434
    %v103 = vsel %vm102, %v74, %v90
    %v105 = vrot.slane %v103, 2
    %vm106 = vcmask 1043459
    %v107 = vsel %vm106, %v74, %v90
    %v109 = vrot.slane %v107, 3
    %v112 = vsel %vm94, %v75, %v91
    %v115 = vsel %vm94, %v76, %v92
    %v116 = vsel %vm98, %v76, %v92
    %v118 = vrot.slane %v116, 1
    %v119 = vsel %vm102, %v76, %v92
    %v121 = vrot.slane %v119, 2
    %v122 = vsel %vm106, %v76, %v92
    %v124 = vrot.slane %v122, 3
    %v127 = vsel %vm94, %v77, %v93
    %128 = vst [vmem:[#allocation1] ss:$9 sm:$0xff] %v97
    %s130 = scalar_lea.vmem [#allocation1], 1
    %131 = vst [vmem:[%s130] ss:$9 sm:$0xff] %v101
    %s133 = scalar_lea.vmem [#allocation1], 2
    %134 = vst [vmem:[%s133] ss:$9 sm:$0xff] %v105
    %s136 = scalar_lea.vmem [#allocation1], 3
    %137 = vst [vmem:[%s136] ss:$9 sm:$0xff] %v109
    %s138 = scalar_lea.vmem [#allocation1], 4
    %139 = vst [vmem:[%s138] ss:$9 sm:$0xff] %v112
    %s140 = scalar_lea.vmem [#allocation1], 5
    %141 = vst [vmem:[%s140] ss:$9 sm:$0xff] %v115
    %s143 = scalar_lea.vmem [#allocation1], 6
    %144 = vst [vmem:[%s143] ss:$9 sm:$0xff] %v118
    %s146 = scalar_lea.vmem [#allocation1], 7
    %147 = vst [vmem:[%s146] ss:$9 sm:$0xff] %v121
    %v148 = vld [vmem:[#allocation1] sm:$0xff]
    %150 = vst [vmem:[#allocation1] ss:$9 sm:$0xff] %v124
    %151 = vst [vmem:[%s130] ss:$9 sm:$0xff] %v127
    %v152 = vld [vmem:[#allocation1] sm:$0xff]
    %v161 = vunpack.c.l.b16 %v78
    %v162 = vunpack.c.l.b16 %v79
    %v163 = vunpack.c.l.b16 %v80
    %v164 = vunpack.c.l.b16 %v81
    %v165 = vunpack.c.l.b16 %v82
    %v166 = vunpack.c.l.b16 %v83
    %v167 = vunpack.c.l.b16 %v84
    %v168 = vunpack.c.l.b16 %v85
    %v169 = vpack.c.b16 %v162, %v161
    %v170 = vpack.c.b16 %v164, %v163
    %v171 = vpack.c.b16 %v166, %v165
    %v172 = vpack.c.b16 %v168, %v167
    %vm177 = vcmask 523264
    %v178 = vsel %vm177, %v148, 0
    %v180 = vsel %vm177, %v152, 0
    %182 = vmatpush.bf16.msra.mxu0 0
    %183 = vmatpush.bf16.msra.mxu0 0
    %184 = vmatpush.bf16.msra.mxu0 0
    %185 = vmatpush.bf16.msra.mxu0 0
    %186 = vmatpush.bf16.msra.mxu0 %v172
    %187 = vmatpush.bf16.msra.mxu0 %v171
    %188 = vmatpush.bf16.msra.mxu0 %v170
    %189 = vmatpush.bf16.msra.mxu0 %v169
    %190 = vmatmul.bf16.gmra.mxu0 %v178
    %v191 = vpop.f32.mrf.mxu0
    %v192 = vadd.f32 0.0, %v191
    %v193 = vpop.f32.mrf.mxu0
    %v194 = vadd.f32 0.0, %v193
    %195 = vmatmul.bf16.gmra.mxu0 %v180
    %v196 = vpop.f32.mrf.mxu0
    %v197 = vadd.f32 0.0, %v196
    %v198 = vpop.f32.mrf.mxu0
    %199 = vdwg.mxu0
    %v203 = vrot.slane %v192, 2
    %v204 = vrot.slane %v192, 4
    %v205 = vrot.slane %v192, 6
    %v206 = vrot.slane %v194, 2
    %v207 = vrot.slane %v194, 4
    %v208 = vrot.slane %v194, 6
    %v209 = vrot.slane %v197, 2
    %210 = vst [vmem:[#allocation1] ss:$4 sm:$0xff] %v192
    %s211 = scalar_lea.vmem [#allocation1], 1
    %212 = vst [vmem:[%s211] ss:$4 sm:$0xff] %v203
    %s213 = scalar_lea.vmem [#allocation1], 2
    %214 = vst [vmem:[%s213] ss:$4 sm:$0xff] %v204
    %s215 = scalar_lea.vmem [#allocation1], 3
    %216 = vst [vmem:[%s215] ss:$4 sm:$0xff] %v205
    %v217 = vld.sshfl [vmem:[#allocation1] sm:$0xff pattern:$0x73625140]
    %s218 = scalar_lea.vmem [#allocation1], 32
    %219 = vst [vmem:[%s218] ss:$4 sm:$0xff] %v206
    %s220 = scalar_lea.vmem [#allocation1], 33
    %221 = vst [vmem:[%s220] ss:$4 sm:$0xff] %v207
    %s222 = scalar_lea.vmem [#allocation1], 34
    %223 = vst [vmem:[%s222] ss:$4 sm:$0xff] %v208
    %s224 = scalar_lea.vmem [#allocation1], 35
    %225 = vst [vmem:[%s224] ss:$4 sm:$0xff] %v197
    %v226 = vld.sshfl [vmem:[#allocation1 + $0x20] sm:$0xff pattern:$0x73625140]
    %v229 = vpack.c.bf16 %v217, %v217
    %v230 = vpack.c.bf16 %v226, %v226
    %v231 = vld [vmem:[%s2] sm:$0xf]
    %v232 = vld [vmem:[%s2 + $0x4] sm:$0xf]
    %v233 = vld [vmem:[%s2 + $0x8] sm:$0xf]
    %v234 = vld [vmem:[%s2 + $0xc] sm:$0xf]
    %235 = vst [vmem:[#allocation1] ss:$4 sm:$0xff] %v192
    %s236 = scalar_lea.vmem [#allocation1], 1
    %237 = vst [vmem:[%s236] ss:$4 sm:$0xff] %v203
    %s238 = scalar_lea.vmem [#allocation1], 2
    %239 = vst [vmem:[%s238] ss:$4 sm:$0xff] %v204
    %s240 = scalar_lea.vmem [#allocation1], 3
    %241 = vst [vmem:[%s240] ss:$4 sm:$0xff] %v205
    %v242 = vld.sshfl [vmem:[#allocation1] sm:$0xff pattern:$0x73625140]
    %s243 = scalar_lea.vmem [#allocation1], 32
    %244 = vst [vmem:[%s243] ss:$4 sm:$0xff] %v206
    %s245 = scalar_lea.vmem [#allocation1], 33
    %246 = vst [vmem:[%s245] ss:$4 sm:$0xff] %v207
    %s247 = scalar_lea.vmem [#allocation1], 34
    %248 = vst [vmem:[%s247] ss:$4 sm:$0xff] %v208
    %s249 = scalar_lea.vmem [#allocation1], 35
    %250 = vst [vmem:[%s249] ss:$4 sm:$0xff] %v197
    %v251 = vld.sshfl [vmem:[#allocation1 + $0x20] sm:$0xff pattern:$0x73625140]
    %v254 = vpack.c.bf16 %v242, %v242
    %v255 = vpack.c.bf16 %v251, %v251
    %s256 = scalar_lea.vmem %s2, 16
    %v257 = vld [vmem:[%s256] sm:$0xf]
    %v258 = vld [vmem:[%s256 + $0x4] sm:$0xf]
    %v259 = vld [vmem:[%s256 + $0x8] sm:$0xf]
    %v260 = vld [vmem:[%s256 + $0xc] sm:$0xf]
    %v263 = vrot.slane %v254, 3
    %v264 = vrot.slane %v255, 3
    %v267 = vsel %vm94, %v254, %v263
    %v269 = vsel %vm98, %v254, %v263
    %v271 = vrot.slane %v269, 1
    %v272 = vsel %vm102, %v254, %v263
    %v274 = vrot.slane %v272, 2
    %v275 = vsel %vm106, %v254, %v263
    %v277 = vrot.slane %v275, 3
    %v280 = vsel %vm94, %v255, %v264
    %v282 = vsel %vm98, %v255, %v264
    %v284 = vrot.slane %v282, 1
    %v285 = vsel %vm102, %v255, %v264
    %v287 = vrot.slane %v285, 2
    %v288 = vsel %vm106, %v255, %v264
    %v290 = vrot.slane %v288, 3
    %v291 = vunpack.i.h.s16 %v267
    %v292 = vunpack.i.l.s16 %v271
    %v293 = vunpack.i.h.s16 %v271
    %v294 = vunpack.i.l.s16 %v274
    %v295 = vunpack.i.h.s16 %v274
    %v296 = vunpack.i.l.s16 %v277
    %v297 = vunpack.i.h.s16 %v277
    %v298 = vunpack.i.h.s16 %v280
    %v299 = vunpack.i.l.s16 %v284
    %v300 = vunpack.i.h.s16 %v284
    %v301 = vunpack.i.l.s16 %v287
    %v302 = vunpack.i.h.s16 %v287
    %v303 = vunpack.i.l.s16 %v290
    %v304 = vunpack.i.h.s16 %v290
    %v305 = vpack.i.b16 %v292, %v291
    %v306 = vpack.i.b16 %v294, %v293
    %v307 = vpack.i.b16 %v296, %v295
    %v308 = vpack.i.b16 %v298, %v297
    %v309 = vpack.i.b16 %v300, %v299
    %v310 = vpack.i.b16 %v302, %v301
    %v311 = vpack.i.b16 %v304, %v303
    %313 = vst [vmem:[#allocation1] ss:$9 sm:$0xff] %v305
    %s315 = scalar_lea.vmem [#allocation1], 1
    %316 = vst [vmem:[%s315] ss:$9 sm:$0xff] %v306
    %s318 = scalar_lea.vmem [#allocation1], 2
    %319 = vst [vmem:[%s318] ss:$9 sm:$0xff] %v307
    %s321 = scalar_lea.vmem [#allocation1], 3
    %322 = vst [vmem:[%s321] ss:$9 sm:$0xff] %v308
    %s324 = scalar_lea.vmem [#allocation1], 4
    %325 = vst [vmem:[%s324] ss:$9 sm:$0xff] %v309
    %s327 = scalar_lea.vmem [#allocation1], 5
    %328 = vst [vmem:[%s327] ss:$9 sm:$0xff] %v310
    %s330 = scalar_lea.vmem [#allocation1], 6
    %331 = vst [vmem:[%s330] ss:$9 sm:$0xff] %v311
    %v332 = vld [vmem:[#allocation1] sm:$0xff]
    %v337 = vunpack.c.l.b16 %v257
    %v338 = vunpack.c.l.b16 %v258
    %v339 = vunpack.c.l.b16 %v259
    %v340 = vunpack.c.l.b16 %v260
    %v341 = vpack.c.b16 %v338, %v337
    %v342 = vpack.c.b16 %v340, %v339
    %vm345 = vcmask 261120
    %v346 = vsel %vm345, %v332, 0
    %348 = vmatpush.bf16.msra.mxu0 0
    %349 = vmatpush.bf16.msra.mxu0 0
    %350 = vmatpush.bf16.msra.mxu0 0
    %351 = vmatpush.bf16.msra.mxu0 0
    %352 = vmatpush.bf16.msra.mxu0 0
    %353 = vmatpush.bf16.msra.mxu0 0
    %354 = vmatpush.bf16.msra.mxu0 %v342
    %355 = vmatpush.bf16.msra.mxu0 %v341
    %356 = vmatmul.bf16.gmra.mxu0 %v346
    %v357 = vpop.f32.mrf.mxu0
    %v358 = vadd.f32 0.0, %v357
    %v359 = vpop.f32.mrf.mxu0
    %v360 = vadd.f32 0.0, %v359
    %361 = vdwg.mxu0
    %v364 = vrot.slane %v229, 3
    %v365 = vrot.slane %v230, 3
    %v368 = vsel %vm94, %v229, %v364
    %v370 = vsel %vm98, %v229, %v364
    %v372 = vrot.slane %v370, 1
    %v373 = vsel %vm102, %v229, %v364
    %v375 = vrot.slane %v373, 2
    %v376 = vsel %vm106, %v229, %v364
    %v378 = vrot.slane %v376, 3
    %v381 = vsel %vm94, %v230, %v365
    %v383 = vsel %vm98, %v230, %v365
    %v385 = vrot.slane %v383, 1
    %v386 = vsel %vm102, %v230, %v365
    %v388 = vrot.slane %v386, 2
    %v389 = vsel %vm106, %v230, %v365
    %v391 = vrot.slane %v389, 3
    %v392 = vunpack.i.l.s16 %v368
    %v393 = vunpack.i.h.s16 %v368
    %v394 = vunpack.i.l.s16 %v372
    %v395 = vunpack.i.h.s16 %v372
    %v396 = vunpack.i.l.s16 %v375
    %v397 = vunpack.i.h.s16 %v375
    %v398 = vunpack.i.l.s16 %v378
    %v399 = vunpack.i.l.s16 %v381
    %v400 = vunpack.i.h.s16 %v381
    %v401 = vunpack.i.l.s16 %v385
    %v402 = vunpack.i.h.s16 %v385
    %v403 = vunpack.i.l.s16 %v388
    %v404 = vunpack.i.h.s16 %v388
    %v405 = vunpack.i.l.s16 %v391
    %v406 = vpack.i.b16 %v393, %v392
    %v407 = vpack.i.b16 %v395, %v394
    %v408 = vpack.i.b16 %v397, %v396
    %v409 = vpack.i.b16 %v399, %v398
    %v410 = vpack.i.b16 %v401, %v400
    %v411 = vpack.i.b16 %v403, %v402
    %v412 = vpack.i.b16 %v405, %v404
    %414 = vst [vmem:[#allocation1] ss:$9 sm:$0xff] %v406
    %s416 = scalar_lea.vmem [#allocation1], 1
    %417 = vst [vmem:[%s416] ss:$9 sm:$0xff] %v407
    %s419 = scalar_lea.vmem [#allocation1], 2
    %420 = vst [vmem:[%s419] ss:$9 sm:$0xff] %v408
    %s422 = scalar_lea.vmem [#allocation1], 3
    %423 = vst [vmem:[%s422] ss:$9 sm:$0xff] %v409
    %s425 = scalar_lea.vmem [#allocation1], 4
    %426 = vst [vmem:[%s425] ss:$9 sm:$0xff] %v410
    %s428 = scalar_lea.vmem [#allocation1], 5
    %429 = vst [vmem:[%s428] ss:$9 sm:$0xff] %v411
    %s431 = scalar_lea.vmem [#allocation1], 6
    %432 = vst [vmem:[%s431] ss:$9 sm:$0xff] %v412
    %v433 = vld [vmem:[#allocation1] sm:$0xff]
    %v438 = vunpack.c.l.b16 %v231
    %v439 = vunpack.c.l.b16 %v232
    %v440 = vunpack.c.l.b16 %v233
    %v441 = vunpack.c.l.b16 %v234
    %v442 = vpack.c.b16 %v439, %v438
    %v443 = vpack.c.b16 %v441, %v440
    %v446 = vsel %vm345, %v433, 0
    %448 = vmatpush.bf16.msra.mxu0 0
    %449 = vmatpush.bf16.msra.mxu0 0
    %450 = vmatpush.bf16.msra.mxu0 0
    %451 = vmatpush.bf16.msra.mxu0 0
    %452 = vmatpush.bf16.msra.mxu0 0
    %453 = vmatpush.bf16.msra.mxu0 0
    %454 = vmatpush.bf16.msra.mxu0 %v443
    %455 = vmatpush.bf16.msra.mxu0 %v442
    %456 = vmatmul.bf16.gmra.mxu0 %v446
    %v457 = vpop.f32.mrf.mxu0
    %v458 = vadd.f32 %v358, %v457
    %v459 = vpop.f32.mrf.mxu0
    %v460 = vadd.f32 %v360, %v459
    %461 = vdwg.mxu0
    %v464 = vrot.slane %v458, 1
    %v465 = vrot.slane %v458, 2
    %v466 = vrot.slane %v458, 3
    %v467 = vrot.slane %v458, 4
    %v468 = vrot.slane %v458, 5
    %v469 = vrot.slane %v458, 6
    %v470 = vrot.slane %v458, 7
    %v471 = vrot.slane %v460, 1
    %v472 = vrot.slane %v460, 2
    %v473 = vrot.slane %v460, 3
    %v474 = vrot.slane %v460, 4
    %v475 = vrot.slane %v460, 5
    %488 = vst [vmem:[#allocation1] ss:$4 sm:$0xff] %v203
    %s489 = scalar_lea.vmem [#allocation1], 1
    %490 = vst [vmem:[%s489] ss:$4 sm:$0xff] %v204
    %s491 = scalar_lea.vmem [#allocation1], 2
    %492 = vst [vmem:[%s491] ss:$4 sm:$0xff] %v205
    %s493 = scalar_lea.vmem [#allocation1], 3
    %494 = vst [vmem:[%s493] ss:$4 sm:$0xff] %v194
    %v495 = vld.sshfl [vmem:[#allocation1] sm:$0xff pattern:$0x73625140]
    %s496 = scalar_lea.vmem [#allocation1], 32
    %497 = vst [vmem:[%s496] ss:$4 sm:$0xff] %v207
    %s498 = scalar_lea.vmem [#allocation1], 33
    %499 = vst [vmem:[%s498] ss:$4 sm:$0xff] %v208
    %s500 = scalar_lea.vmem [#allocation1], 34
    %501 = vst [vmem:[%s500] ss:$4 sm:$0xff] %v197
    %s502 = scalar_lea.vmem [#allocation1], 35
    %503 = vst [vmem:[%s502] ss:$4 sm:$0xff] %v209
    %v504 = vld.sshfl [vmem:[#allocation1 + $0x20] sm:$0xff pattern:$0x73625140]
    %v507 = vpack.c.bf16 %v495, %v495
    %v508 = vpack.c.bf16 %v504, %v504
    %s509 = scalar_lea.vmem %s2, 32
    %v510 = vld [vmem:[%s509] sm:$0xf]
    %v511 = vld [vmem:[%s509 + $0x4] sm:$0xf]
    %v512 = vld [vmem:[%s509 + $0x8] sm:$0xf]
    %v513 = vld [vmem:[%s509 + $0xc] sm:$0xf]
    %v516 = vrot.slane %v507, 3
    %v517 = vrot.slane %v508, 3
    %v520 = vsel %vm94, %v507, %v516
    %v522 = vsel %vm98, %v507, %v516
    %v524 = vrot.slane %v522, 1
    %v525 = vsel %vm102, %v507, %v516
    %v527 = vrot.slane %v525, 2
    %v528 = vsel %vm106, %v507, %v516
    %v530 = vrot.slane %v528, 3
    %v533 = vsel %vm94, %v508, %v517
    %v535 = vsel %vm98, %v508, %v517
    %v537 = vrot.slane %v535, 1
    %v538 = vsel %vm102, %v508, %v517
    %v540 = vrot.slane %v538, 2
    %v541 = vsel %vm106, %v508, %v517
    %v543 = vrot.slane %v541, 3
    %v544 = vunpack.i.l.s16 %v520
    %v545 = vunpack.i.h.s16 %v520
    %v546 = vunpack.i.l.s16 %v524
    %v547 = vunpack.i.h.s16 %v524
    %v548 = vunpack.i.l.s16 %v527
    %v549 = vunpack.i.h.s16 %v527
    %v550 = vunpack.i.l.s16 %v530
    %v551 = vunpack.i.l.s16 %v533
    %v552 = vunpack.i.h.s16 %v533
    %v553 = vunpack.i.l.s16 %v537
    %v554 = vunpack.i.h.s16 %v537
    %v555 = vunpack.i.l.s16 %v540
    %v556 = vunpack.i.h.s16 %v540
    %v557 = vunpack.i.l.s16 %v543
    %v558 = vpack.i.b16 %v545, %v544
    %v559 = vpack.i.b16 %v547, %v546
    %v560 = vpack.i.b16 %v549, %v548
    %v561 = vpack.i.b16 %v551, %v550
    %v562 = vpack.i.b16 %v553, %v552
    %v563 = vpack.i.b16 %v555, %v554
    %v564 = vpack.i.b16 %v557, %v556
    %566 = vst [vmem:[#allocation1] ss:$9 sm:$0xff] %v558
    %s568 = scalar_lea.vmem [#allocation1], 1
    %569 = vst [vmem:[%s568] ss:$9 sm:$0xff] %v559
    %s571 = scalar_lea.vmem [#allocation1], 2
    %572 = vst [vmem:[%s571] ss:$9 sm:$0xff] %v560
    %s574 = scalar_lea.vmem [#allocation1], 3
    %575 = vst [vmem:[%s574] ss:$9 sm:$0xff] %v561
    %s577 = scalar_lea.vmem [#allocation1], 4
    %578 = vst [vmem:[%s577] ss:$9 sm:$0xff] %v562
    %s580 = scalar_lea.vmem [#allocation1], 5
    %581 = vst [vmem:[%s580] ss:$9 sm:$0xff] %v563
    %s583 = scalar_lea.vmem [#allocation1], 6
    %584 = vst [vmem:[%s583] ss:$9 sm:$0xff] %v564
    %v585 = vld [vmem:[#allocation1] sm:$0xff]
    %v590 = vunpack.c.l.b16 %v510
    %v591 = vunpack.c.l.b16 %v511
    %v592 = vunpack.c.l.b16 %v512
    %v593 = vunpack.c.l.b16 %v513
    %v594 = vpack.c.b16 %v591, %v590
    %v595 = vpack.c.b16 %v593, %v592
    %v598 = vsel %vm345, %v585, 0
    %600 = vmatpush.bf16.msra.mxu0 0
    %601 = vmatpush.bf16.msra.mxu0 0
    %602 = vmatpush.bf16.msra.mxu0 0
    %603 = vmatpush.bf16.msra.mxu0 0
    %604 = vmatpush.bf16.msra.mxu0 0
    %605 = vmatpush.bf16.msra.mxu0 0
    %606 = vmatpush.bf16.msra.mxu0 %v595
    %607 = vmatpush.bf16.msra.mxu0 %v594
    %608 = vmatmul.bf16.gmra.mxu0 %v598
    %v609 = vpop.f32.mrf.mxu0
    %v610 = vadd.f32 0.0, %v609
    %v611 = vpop.f32.mrf.mxu0
    %v612 = vadd.f32 0.0, %v611
    %613 = vdwg.mxu0
    %v616 = vrot.slane %v610, 1
    %v617 = vrot.slane %v610, 2
    %v618 = vrot.slane %v610, 3
    %v619 = vrot.slane %v610, 4
    %v620 = vrot.slane %v610, 5
    %v621 = vrot.slane %v610, 6
    %v622 = vrot.slane %v610, 7
    %v623 = vrot.slane %v612, 1
    %v624 = vrot.slane %v612, 2
    %v625 = vrot.slane %v612, 3
    %v626 = vrot.slane %v612, 4
    %v627 = vrot.slane %v612, 5
    %v640 = vadd.f32 %v458, %v610
    %v641 = vadd.f32 %v464, %v616
    %v642 = vadd.f32 %v465, %v617
    %v643 = vadd.f32 %v466, %v618
    %v644 = vadd.f32 %v467, %v619
    %v645 = vadd.f32 %v468, %v620
    %v646 = vadd.f32 %v469, %v621
    %v647 = vadd.f32 %v470, %v622
    %v648 = vadd.f32 %v460, %v612
    %v649 = vadd.f32 %v471, %v623
    %v650 = vadd.f32 %v472, %v624
    %v651 = vadd.f32 %v473, %v625
    %v652 = vadd.f32 %v474, %v626
    %v653 = vadd.f32 %v475, %v627
    %654 = vst [vmem:[#allocation1] ss:$4 sm:$0xff] %v203
    %s655 = scalar_lea.vmem [#allocation1], 1
    %656 = vst [vmem:[%s655] ss:$4 sm:$0xff] %v204
    %s657 = scalar_lea.vmem [#allocation1], 2
    %658 = vst [vmem:[%s657] ss:$4 sm:$0xff] %v205
    %s659 = scalar_lea.vmem [#allocation1], 3
    %660 = vst [vmem:[%s659] ss:$4 sm:$0xff] %v194
    %v661 = vld.sshfl [vmem:[#allocation1] sm:$0xff pattern:$0x73625140]
    %s662 = scalar_lea.vmem [#allocation1], 32
    %663 = vst [vmem:[%s662] ss:$4 sm:$0xff] %v207
    %s664 = scalar_lea.vmem [#allocation1], 33
    %665 = vst [vmem:[%s664] ss:$4 sm:$0xff] %v208
    %s666 = scalar_lea.vmem [#allocation1], 34
    %667 = vst [vmem:[%s666] ss:$4 sm:$0xff] %v197
    %s668 = scalar_lea.vmem [#allocation1], 35
    %669 = vst [vmem:[%s668] ss:$4 sm:$0xff] %v209
    %v670 = vld.sshfl [vmem:[#allocation1 + $0x20] sm:$0xff pattern:$0x73625140]
    %v673 = vpack.c.bf16 %v661, %v661
    %v674 = vpack.c.bf16 %v670, %v670
    %s675 = scalar_lea.vmem %s2, 48
    %v676 = vld [vmem:[%s675] sm:$0xf]
    %v677 = vld [vmem:[%s675 + $0x4] sm:$0xf]
    %v678 = vld [vmem:[%s675 + $0x8] sm:$0xf]
    %v679 = vld [vmem:[%s675 + $0xc] sm:$0xf]
    %v682 = vrot.slane %v673, 3
    %v683 = vrot.slane %v674, 3
    %v686 = vsel %vm94, %v673, %v682
    %v688 = vsel %vm98, %v673, %v682
    %v690 = vrot.slane %v688, 1
    %v691 = vsel %vm102, %v673, %v682
    %v693 = vrot.slane %v691, 2
    %v694 = vsel %vm106, %v673, %v682
    %v696 = vrot.slane %v694, 3
    %v699 = vsel %vm94, %v674, %v683
    %v701 = vsel %vm98, %v674, %v683
    %v703 = vrot.slane %v701, 1
    %v704 = vsel %vm102, %v674, %v683
    %v706 = vrot.slane %v704, 2
    %v707 = vsel %vm106, %v674, %v683
    %v709 = vrot.slane %v707, 3
    %v710 = vunpack.i.h.s16 %v686
    %v711 = vunpack.i.l.s16 %v690
    %v712 = vunpack.i.h.s16 %v690
    %v713 = vunpack.i.l.s16 %v693
    %v714 = vunpack.i.h.s16 %v693
    %v715 = vunpack.i.l.s16 %v696
    %v716 = vunpack.i.h.s16 %v696
    %v717 = vunpack.i.h.s16 %v699
    %v718 = vunpack.i.l.s16 %v703
    %v719 = vunpack.i.h.s16 %v703
    %v720 = vunpack.i.l.s16 %v706
    %v721 = vunpack.i.h.s16 %v706
    %v722 = vunpack.i.l.s16 %v709
    %v723 = vunpack.i.h.s16 %v709
    %v724 = vpack.i.b16 %v711, %v710
    %v725 = vpack.i.b16 %v713, %v712
    %v726 = vpack.i.b16 %v715, %v714
    %v727 = vpack.i.b16 %v717, %v716
    %v728 = vpack.i.b16 %v719, %v718
    %v729 = vpack.i.b16 %v721, %v720
    %v730 = vpack.i.b16 %v723, %v722
    %732 = vst [vmem:[#allocation1] ss:$9 sm:$0xff] %v724
    %s734 = scalar_lea.vmem [#allocation1], 1
    %735 = vst [vmem:[%s734] ss:$9 sm:$0xff] %v725
    %s737 = scalar_lea.vmem [#allocation1], 2
    %738 = vst [vmem:[%s737] ss:$9 sm:$0xff] %v726
    %s740 = scalar_lea.vmem [#allocation1], 3
    %741 = vst [vmem:[%s740] ss:$9 sm:$0xff] %v727
    %s743 = scalar_lea.vmem [#allocation1], 4
    %744 = vst [vmem:[%s743] ss:$9 sm:$0xff] %v728
    %s746 = scalar_lea.vmem [#allocation1], 5
    %747 = vst [vmem:[%s746] ss:$9 sm:$0xff] %v729
    %s749 = scalar_lea.vmem [#allocation1], 6
    %750 = vst [vmem:[%s749] ss:$9 sm:$0xff] %v730
    %v751 = vld [vmem:[#allocation1] sm:$0xff]
    %v756 = vunpack.c.l.b16 %v676
    %v757 = vunpack.c.l.b16 %v677
    %v758 = vunpack.c.l.b16 %v678
    %v759 = vunpack.c.l.b16 %v679
    %v760 = vpack.c.b16 %v757, %v756
    %v761 = vpack.c.b16 %v759, %v758
    %v764 = vsel %vm345, %v751, 0
    %766 = vmatpush.bf16.msra.mxu0 0
    %767 = vmatpush.bf16.msra.mxu0 0
    %768 = vmatpush.bf16.msra.mxu0 0
    %769 = vmatpush.bf16.msra.mxu0 0
    %770 = vmatpush.bf16.msra.mxu0 0
    %771 = vmatpush.bf16.msra.mxu0 0
    %772 = vmatpush.bf16.msra.mxu0 %v761
    %773 = vmatpush.bf16.msra.mxu0 %v760
    %774 = vmatmul.bf16.gmra.mxu0 %v764
    %v775 = vpop.f32.mrf.mxu0
    %v776 = vadd.f32 0.0, %v775
    %v777 = vpop.f32.mrf.mxu0
    %v778 = vadd.f32 0.0, %v777
    %779 = vdwg.mxu0
    %v782 = vrot.slane %v776, 1
    %v783 = vrot.slane %v776, 2
    %v784 = vrot.slane %v776, 3
    %v785 = vrot.slane %v776, 4
    %v786 = vrot.slane %v776, 5
    %v787 = vrot.slane %v776, 6
    %v788 = vrot.slane %v776, 7
    %v789 = vrot.slane %v778, 1
    %v790 = vrot.slane %v778, 2
    %v791 = vrot.slane %v778, 3
    %v792 = vrot.slane %v778, 4
    %v793 = vrot.slane %v778, 5
    %v806 = vadd.f32 %v640, %v776
    %v807 = vadd.f32 %v641, %v782
    %v808 = vadd.f32 %v642, %v783
    %v809 = vadd.f32 %v643, %v784
    %v810 = vadd.f32 %v644, %v785
    %v811 = vadd.f32 %v645, %v786
    %v812 = vadd.f32 %v646, %v787
    %v813 = vadd.f32 %v647, %v788
    %v814 = vadd.f32 %v648, %v778
    %v815 = vadd.f32 %v649, %v789
    %v816 = vadd.f32 %v650, %v790
    %v817 = vadd.f32 %v651, %v791
    %v818 = vadd.f32 %v652, %v792
    %v819 = vadd.f32 %v653, %v793
    %v820 = vld [vmem:[%s3] sm:$0x7f]
    %vm821 = vcmp.ne.f32.partialorder %v820, 0.0
    %v822 = vsel %vm821, 1, 0
    %vm823 = vcmp.eq.s32.totalorder %v822, 1
    %838 = vst [vmem:[#allocation1] ss:$9 sm:$0xff] %v806
    %s839 = scalar_lea.vmem [#allocation1], 1
    %840 = vst [vmem:[%s839] ss:$9 sm:$0xff] %v807
    %s841 = scalar_lea.vmem [#allocation1], 2
    %842 = vst [vmem:[%s841] ss:$9 sm:$0xff] %v808
    %s843 = scalar_lea.vmem [#allocation1], 3
    %844 = vst [vmem:[%s843] ss:$9 sm:$0xff] %v809
    %s845 = scalar_lea.vmem [#allocation1], 4
    %846 = vst [vmem:[%s845] ss:$9 sm:$0xff] %v810
    %s847 = scalar_lea.vmem [#allocation1], 5
    %848 = vst [vmem:[%s847] ss:$9 sm:$0xff] %v811
    %s849 = scalar_lea.vmem [#allocation1], 6
    %850 = vst [vmem:[%s849] ss:$9 sm:$0xff] %v812
    %v851 = vld [vmem:[#allocation1] sm:$0xff]
    %852 = vst [vmem:[#allocation1] ss:$9 sm:$0xff] %v813
    %853 = vst [vmem:[%s839] ss:$9 sm:$0xff] %v814
    %854 = vst [vmem:[%s841] ss:$9 sm:$0xff] %v815
    %855 = vst [vmem:[%s843] ss:$9 sm:$0xff] %v816
    %856 = vst [vmem:[%s845] ss:$9 sm:$0xff] %v817
    %857 = vst [vmem:[%s847] ss:$9 sm:$0xff] %v818
    %858 = vst [vmem:[%s849] ss:$9 sm:$0xff] %v819
    %v859 = vld [vmem:[#allocation1] sm:$0xff]
    %v862 = vsel %vm823, %v851, -3.4028235e+38
    %v863 = vsel %vm823, %v859, -3.4028235e+38
    %vm864 = vcmask 1046528
    %v865 = vsel %vm864, %v862, -inf
    %v866 = vrot.slane %v865, 4
    %v867 = vmax.f32 %v865, %v866
    %v868 = vrot.slane %v867, 2
    %v869 = vmax.f32 %v867, %v868
    %v870 = vrot.slane %v869, 1
    %v871 = vmax.f32 %v869, %v870
    %v872 = vsel %vm864, %v863, -inf
    %v873 = vrot.slane %v872, 4
    %v874 = vmax.f32 %v872, %v873
    %v875 = vrot.slane %v874, 2
    %v876 = vmax.f32 %v874, %v875
    %v877 = vrot.slane %v876, 1
    %v878 = vmax.f32 %v876, %v877
    %v879 = vld [vmem:[%s4] sm:$0x1]
    %v881 = vperm.slane %v879, 0
    %v883 = vadd.f32 %v871, %v881
    %v884 = vadd.f32 %v878, %v881
    %v885 = vmax.f32 %v883, 0.0
    %v886 = vmax.f32 %v884, 0.0
    %v887 = vpack.c.bf16 %v885, %v885
    %v888 = vpack.c.bf16 %v886, %v886
    %v889 = vld [vmem:[#allocation2] sm:$0xf]
    %v890 = vld [vmem:[#allocation2 + $0x4] sm:$0xf]
    %v891 = vld [vmem:[#allocation2 + $0x8] sm:$0xf]
    %v892 = vld [vmem:[#allocation2 + $0xc] sm:$0xf]
    %v893 = vld [vmem:[#allocation2 + $0x10] sm:$0xf]
    %v894 = vld [vmem:[#allocation2 + $0x14] sm:$0xf]
    %v895 = vld [vmem:[#allocation2 + $0x18] sm:$0xf]
    %v896 = vld [vmem:[#allocation2 + $0x1c] sm:$0xf]
    %v897 = vld [vmem:[#allocation2 + $0x20] sm:$0xf]
    %v898 = vld [vmem:[#allocation2 + $0x24] sm:$0xf]
    %v899 = vld [vmem:[#allocation2 + $0x28] sm:$0xf]
    %v900 = vld [vmem:[#allocation2 + $0x2c] sm:$0xf]
    %v901 = vld [vmem:[#allocation2 + $0x30] sm:$0xf]
    %v902 = vld [vmem:[#allocation2 + $0x34] sm:$0xf]
    %v903 = vld [vmem:[#allocation2 + $0x38] sm:$0xf]
    %v904 = vld [vmem:[#allocation2 + $0x3c] sm:$0xf]
    %v905 = vld [vmem:[%s6] sm:$0x1]
    %v907 = vperm.slane %v905, 0
    %v911 = vunpack.c.l.b16 %v887
    %v912 = vunpack.c.l.b16 %v888
    %v913 = vrot.slane %v912, 7
    %v914 = vsel %vm98, %v913, %v911
    %v915 = vpack.c.b16 %v914, %v914
    %v933 = vunpack.c.l.b16 %v889
    %v934 = vunpack.c.l.b16 %v890
    %v935 = vunpack.c.l.b16 %v891
    %v936 = vunpack.c.l.b16 %v892
    %v937 = vunpack.c.l.b16 %v893
    %v938 = vunpack.c.l.b16 %v894
    %v939 = vunpack.c.l.b16 %v895
    %v940 = vunpack.c.l.b16 %v896
    %v941 = vunpack.c.l.b16 %v897
    %v942 = vunpack.c.l.b16 %v898
    %v943 = vunpack.c.l.b16 %v899
    %v944 = vunpack.c.l.b16 %v900
    %v945 = vunpack.c.l.b16 %v901
    %v946 = vunpack.c.l.b16 %v902
    %v947 = vunpack.c.l.b16 %v903
    %v948 = vunpack.c.l.b16 %v904
    %v949 = vpack.c.b16 %v934, %v933
    %v950 = vpack.c.b16 %v936, %v935
    %v951 = vpack.c.b16 %v938, %v937
    %v952 = vpack.c.b16 %v940, %v939
    %v953 = vpack.c.b16 %v942, %v941
    %v954 = vpack.c.b16 %v944, %v943
    %v955 = vpack.c.b16 %v946, %v945
    %v956 = vpack.c.b16 %v948, %v947
    %965 = vmatpush.bf16.msra.mxu0 %v956
    %966 = vmatpush.bf16.msra.mxu0 %v955
    %967 = vmatpush.bf16.msra.mxu0 %v954
    %968 = vmatpush.bf16.msra.mxu0 %v953
    %969 = vmatpush.bf16.msra.mxu0 %v952
    %970 = vmatpush.bf16.msra.mxu0 %v951
    %971 = vmatpush.bf16.msra.mxu0 %v950
    %972 = vmatpush.bf16.msra.mxu0 %v949
    %973 = vmatmul.bf16.gmra.mxu0 %v915
    %v974 = vpop.f32.mrf.mxu0
    %v975 = vadd.f32 %v907, %v974
    %v976 = vpop.f32.mrf.mxu0
    %977 = vdwg.mxu0
    %978 = vst [vmem:[#allocation5] sm:$0x3] %v975
    // Predicated region
    $region34: #{tpu_custom_call.1} parent=1 // pred_check
      _
    $region35: #{tpu_custom_call.1} parent=1 // pred_check_branch
      %980 = sbr.rel (0) target = $region37
    $region36: #{tpu_custom_call.1} parent=1 // pred_region
      %982 = vsyncadd [#allocation4], 0
      %s984 = sshll.u32 [#allocation5], 4
      %s985 = int_to_ptr.vmem [resolvable:$true] %s984
      %s986 = sshll.u32 %s7, 4
      %s987 = int_to_ptr.hbm [resolvable:$true] %s986
      %989 = dma.vmem_to_hbm [thread:$0]  %s985, 32, %s987, [#allocation4]
    $region37: #{tpu_custom_call.1} parent=1 // pred_fallthru
      _
    // Predicated region
    $region38: #{tpu_custom_call.1} parent=1 // pred_check
      _
    $region39: #{tpu_custom_call.1} parent=1 // pred_check_branch
      %991 = sbr.rel (0) target = $region41
    $region40: #{tpu_custom_call.1} parent=1 // pred_region
      %993 = dma.done [#allocation4], 32
    $region41: #{tpu_custom_call.1} parent=1 // pred_fallthru
      _
    %994 = vsyncpa [#allocation3], 1
    %995 = vsyncpa [#allocation4], 1

</llo_original>
